<compile_context>
chip_gen: v7x
topology: tpu7x:2x2x1
jax: 0.10.0
libtpu: 0.0.40
codegen_flags: <defaults>
</compile_context>

<pallas_src>
import jax
import jax.numpy as jnp
from jax import lax
from jax.experimental import pallas as pl
from jax.experimental.pallas import tpu as pltpu

VERY_NEGATIVE_NUMBER = -1e30


def _attention_flow_kernel(con_lens_ref, qu_lens_ref,   # scalar-prefetch (SMEM)
                           ctx_ref, qst_ref, w_ref,     # inputs (VMEM tiles)
                           out_ref):                    # output (VMEM tile)
    # Per grid step g: ctx_ref (BB, T, D), qst_ref (BB, J, D), w_ref (3, D)
    # with rows [w_c, w_q, w_cq], out_ref (BB, T, 4D).
    g = pl.program_id(0)
    BB, T, D = ctx_ref.shape
    J = qst_ref.shape[1]

    c = ctx_ref[...].astype(jnp.float32)          # (BB, T, D)
    q = qst_ref[...].astype(jnp.float32)          # (BB, J, D)
    w1 = w_ref[0:1, :].astype(jnp.float32)        # (1, D)  weights on c
    w2 = w_ref[1:2, :].astype(jnp.float32)        # (1, D)  weights on q
    w3 = w_ref[2:3, :].astype(jnp.float32)        # (1, D)  weights on c*q

    # S[b,t,j] = <c_bt, w1> + <q_bj, w2> + <c_bt * q_bj, w3>
    #          = <c_bt*w3 + w2, q_bj> + <c_bt, w1>
    # Folding w2 into the MXU LHS removes the M=1 matmul / explicit q.T.
    lhs = c * w3 + w2                                                          # (BB, T, D)
    S = jnp.einsum('btd,bjd->btj', lhs, q,
                   preferred_element_type=jnp.float32)                         # (BB, T, J)
    S = S + jnp.sum(c * w1, axis=2, keepdims=True)                             # + (BB, T, 1)

    # exp_mask: add -1e30 where t >= con_len or j >= qu_len (reference add form)
    t_ids = lax.broadcasted_iota(jnp.int32, (1, T, J), 1)
    j_ids = lax.broadcasted_iota(jnp.int32, (1, T, J), 2)
    r_ids = lax.broadcasted_iota(jnp.int32, (1, T, 1), 1)
    mask_parts, row_parts = [], []
    for b in range(BB):                           # BB is a small static constant
        t_len = con_lens_ref[g * BB + b]
        j_len = qu_lens_ref[g * BB + b]
        valid_b = (t_ids < t_len) & (j_ids < j_len)
        mask_parts.append(jnp.where(valid_b, 0.0, VERY_NEGATIVE_NUMBER))
        row_parts.append((r_ids < t_len).astype(jnp.float32))
    mask_add = mask_parts[0] if BB == 1 else jnp.concatenate(mask_parts, axis=0)
    row_f = row_parts[0] if BB == 1 else jnp.concatenate(row_parts, axis=0)
    S = S + mask_add                                                           # (BB, T, J)

    # context-to-query attention: softmax over the question axis J
    m = jnp.max(S, axis=2, keepdims=True)                                      # (BB, T, 1)
    e = jnp.exp(S - m)
    A = e * (1.0 / jnp.sum(e, axis=2, keepdims=True))                          # (BB, T, J)
    c2q = jnp.einsum('btj,bjd->btd', A, q,
                     preferred_element_type=jnp.float32)                       # (BB, T, D)

    # query-to-context attention: softmax over T of row max (reuse m == max_j S)
    vm = jnp.max(m, axis=1, keepdims=True)                                     # (BB, 1, 1)
    ev = jnp.exp(m - vm)                                                       # (BB, T, 1)
    beta = ev * (1.0 / jnp.sum(ev, axis=1, keepdims=True))                     # (BB, T, 1)
    q2c = jnp.sum(beta * c, axis=1, keepdims=True)                             # (BB, 1, D)

    # G = [c ; c2q ; c*c2q ; c*q2c] * row_mask, written as four direct lane
    # segments (no (T,4D) concat temp; lane-dense when D is a multiple of 128).
    cm = c * row_f
    od = out_ref.dtype
    out_ref[:, :, 0:D]         = cm.astype(od)
    out_ref[:, :, D:2 * D]     = (c2q * row_f).astype(od)
    out_ref[:, :, 2 * D:3 * D] = (cm * c2q).astype(od)
    out_ref[:, :, 3 * D:4 * D] = (cm * q2c).astype(od)


def _pick_batch_block(B, per_elem_bytes, budget_bytes, cap=8):
    """Largest divisor of B that is <= cap and keeps blocks under the budget."""
    best = 1
    for d in range(1, min(B, cap) + 1):
        if B % d == 0 and d * per_elem_bytes <= budget_bytes:
            best = d
    return best


def attention_flow(context_tbd, question_jbd, att_w, con_lens, qu_lens):
    """context_tbd: (T,B,D), question_jbd: (J,B,D), att_w: (3D,1) -> G: (B,T,4D)."""
    T, B, D = context_tbd.shape
    J = question_jbd.shape[0]

    # NOTE: with small D (demo D=32 -> 128 B rows) strided time-major DMA is
    # inefficient, so we keep one contiguous transpose pass per input here.
    # For D >= 128 the (T,B,D) arrays can be fed directly with (T, BB, D) blocks.
    ctx = jnp.transpose(context_tbd, (1, 0, 2))    # (B, T, D)
    qst = jnp.transpose(question_jbd, (1, 0, 2))   # (B, J, D)
    w = att_w.reshape(3, D)                        # rows: w_c, w_q, w_cq

    # Batch packing: BB elements per grid step, bounded by a VMEM budget
    # (generous f32 estimate: double-buffered blocks + in-kernel temporaries).
    per_elem = 4 * (16 * T * D + 3 * J * D + 4 * T * J)
    BB = _pick_batch_block(B, per_elem, budget_bytes=24 * 2**20)
    vmem_limit = int(min(56 * 2**20, max(32 * 2**20, 2 * BB * per_elem)))
    # TODO(synk): for very large T*D (v7x has only 64 MiB VMEM) add a T grid
    # axis with a two-pass / online q2c instead of relying on BB=1 alone.

    grid_spec = pltpu.PrefetchScalarGridSpec(
        num_scalar_prefetch=2,
        grid=(B // BB,),
        in_specs=[
            pl.BlockSpec((BB, T, D), lambda g, cl, ql: (g, 0, 0)),
            pl.BlockSpec((BB, J, D), lambda g, cl, ql: (g, 0, 0)),
            pl.BlockSpec((3, D), lambda g, cl, ql: (0, 0)),
        ],
        out_specs=pl.BlockSpec((BB, T, 4 * D), lambda g, cl, ql: (g, 0, 0)),
    )
    return pl.pallas_call(
        _attention_flow_kernel,
        out_shape=jax.ShapeDtypeStruct((B, T, 4 * D), jnp.float32),
        grid_spec=grid_spec,
        compiler_params=pltpu.CompilerParams(
            # Each grid step writes a disjoint output block -> no carried state,
            # so the batch axis is parallel (lets v7x use both TensorCores).
            dimension_semantics=("parallel",),
            vmem_limit_bytes=vmem_limit,
        ),
    )(con_lens, qu_lens, ctx, qst, w)


def attention_flow_reference(context_tbd, question_jbd, att_w, con_lens, qu_lens):
    """Plain-JAX reference mirroring the PyTorch forward."""
    T, B, D = context_tbd.shape
    J = question_jbd.shape[0]
    c = jnp.transpose(context_tbd, (1, 0, 2))      # (B, T, D)
    q = jnp.transpose(question_jbd, (1, 0, 2))     # (B, J, D)
    cat = jnp.concatenate([
        jnp.broadcast_to(c[:, :, None, :], (B, T, J, D)),
        jnp.broadcast_to(q[:, None, :, :], (B, T, J, D)),
        c[:, :, None, :] * q[:, None, :, :],
    ], axis=-1)                                    # (B, T, J, 3D)
    S = jnp.matmul(cat, att_w)[..., 0]             # (B, T, J)
    t_ids = jnp.arange(T)[None, :, None]
    j_ids = jnp.arange(J)[None, None, :]
    valid = (t_ids < con_lens[:, None, None]) & (j_ids < qu_lens[:, None, None])
    S = S + jnp.where(valid, 0.0, VERY_NEGATIVE_NUMBER)
    A = jax.nn.softmax(S, axis=-1)
    c2q = jnp.matmul(A, q)                         # (B, T, D)
    v = jnp.max(S, axis=2)                         # (B, T)
    beta = jax.nn.softmax(v, axis=-1)
    q2c = jnp.broadcast_to(jnp.einsum('bt,btd->bd', beta, c)[:, None, :], (B, T, D))
    G = jnp.concatenate([c, c2q, c * c2q, c * q2c], axis=-1)
    row_mask = (jnp.arange(T)[None, :, None] < con_lens[:, None, None]).astype(G.dtype)
    return G * row_mask


if __name__ == "__main__":
    T, J, B, D = 16, 8, 2, 32                     # context len, question len, batch, emb
    key = jax.random.PRNGKey(0)
    k1, k2, k3 = jax.random.split(key, 3)
    context = jax.random.normal(k1, (T, B, D), jnp.float32)    # (T, B, D)
    question = jax.random.normal(k2, (J, B, D), jnp.float32)   # (J, B, D)
    # att_w parameter (3*emb_size, 1), deterministic uniform init
    att_w = jax.random.uniform(k3, (3 * D, 1), jnp.float32, -0.1, 0.1)
    con_lens = jnp.array([16, 12], jnp.int32)
    qu_lens = jnp.array([8, 5], jnp.int32)

    out = attention_flow(context, question, att_w, con_lens, qu_lens)
    out = jax.block_until_ready(out)

    ref = attention_flow_reference(context, question, att_w, con_lens, qu_lens)
    assert out.shape == (B, T, 4 * D), out.shape
    assert jnp.allclose(out, ref, rtol=1e-4, atol=1e-4), float(jnp.max(jnp.abs(out - ref)))
    print("KERNEL_OK")
</pallas_src>

<mosaic_0001>
module attributes {stable_mosaic.version = 11 : i64} {
  func.func @_attention_flow_kernel(%arg0: i32, %arg1: memref<2xi32, #tpu.memory_space<smem>>, %arg2: memref<2xi32, #tpu.memory_space<smem>>, %arg3: memref<2x16x32xf32, #tpu.memory_space<vmem>>, %arg4: memref<2x8x32xf32, #tpu.memory_space<vmem>>, %arg5: memref<3x32xf32, #tpu.memory_space<vmem>>, %arg6: memref<2x16x128xf32, #tpu.memory_space<vmem>>) attributes {dimension_semantics = [#tpu.dimension_semantics<parallel>], iteration_bounds = array<i64: 1>, scalar_prefetch = 2 : i64, scratch_operands = 0 : i64, tpu.core_type = #tpu.core_type<tc>, window_params = [{transform_indices = @transform_0, window_bounds = array<i64: 2, 16, 32>}, {transform_indices = @transform_1, window_bounds = array<i64: 2, 8, 32>}, {pipeline_mode = #tpu.pipeline_mode<synchronous>, transform_indices = @transform_2, window_bounds = array<i64: 3, 32>}, {transform_indices = @transform_3, window_bounds = array<i64: 2, 16, 128>}]} {
    %c0 = arith.constant 0 : index
    %c0_0 = arith.constant 0 : index
    %c0_1 = arith.constant 0 : index
    %0 = vector.load %arg3[%c0, %c0_0, %c0_1] : memref<2x16x32xf32, #tpu.memory_space<vmem>>, vector<2x16x32xf32>
    %c0_2 = arith.constant 0 : index
    %c0_3 = arith.constant 0 : index
    %c0_4 = arith.constant 0 : index
    %1 = vector.load %arg4[%c0_2, %c0_3, %c0_4] : memref<2x8x32xf32, #tpu.memory_space<vmem>>, vector<2x8x32xf32>
    %c0_5 = arith.constant 0 : index
    %c0_6 = arith.constant 0 : index
    %2 = vector.load %arg5[%c0_5, %c0_6] : memref<3x32xf32, #tpu.memory_space<vmem>>, vector<1x32xf32>
    %c1 = arith.constant 1 : index
    %c0_7 = arith.constant 0 : index
    %3 = vector.load %arg5[%c1, %c0_7] : memref<3x32xf32, #tpu.memory_space<vmem>>, vector<1x32xf32>
    %c2 = arith.constant 2 : index
    %c0_8 = arith.constant 0 : index
    %4 = vector.load %arg5[%c2, %c0_8] : memref<3x32xf32, #tpu.memory_space<vmem>>, vector<1x32xf32>
    %5 = vector.shape_cast %4 : vector<1x32xf32> to vector<1x1x32xf32>
    %6 = vector.broadcast %5 : vector<1x1x32xf32> to vector<2x16x32xf32>
    %7 = arith.mulf %0, %6 : vector<2x16x32xf32>
    %8 = vector.shape_cast %3 : vector<1x32xf32> to vector<1x1x32xf32>
    %9 = vector.broadcast %8 : vector<1x1x32xf32> to vector<2x16x32xf32>
    %10 = arith.addf %7, %9 : vector<2x16x32xf32>
    "tpu.trace_start"() <{level = 10 : i32, message = "btd,bjd->btj"}> : () -> ()
    %cst = arith.constant dense<0.000000e+00> : vector<2x16x8xf32>
    %11 = tpu.matmul %10, %1, %cst {dimension_numbers = #tpu.dot_dimension_numbers<[2], [2], [1], [1], [0, 0, 0, 1, 1, 1], [0], [0]>} : vector<2x16x32xf32>, vector<2x8x32xf32>, vector<2x16x8xf32> -> vector<2x16x8xf32>
    "tpu.trace_stop"() : () -> ()
    %12 = vector.shape_cast %2 : vector<1x32xf32> to vector<1x1x32xf32>
    %13 = vector.broadcast %12 : vector<1x1x32xf32> to vector<2x16x32xf32>
    %14 = arith.mulf %0, %13 : vector<2x16x32xf32>
    %cst_9 = arith.constant dense<0.000000e+00> : vector<2x16xf32>
    %15 = vector.multi_reduction <add>, %14, %cst_9 [2] : vector<2x16x32xf32> to vector<2x16xf32>
    %16 = vector.shape_cast %15 : vector<2x16xf32> to vector<2x16x1xf32>
    %17 = vector.broadcast %16 : vector<2x16x1xf32> to vector<2x16x8xf32>
    %18 = arith.addf %11, %17 : vector<2x16x8xf32>
    %19 = tpu.iota {dimensions = array<i32: 1>} : vector<1x16x8xi32>
    %20 = tpu.iota {dimensions = array<i32: 2>} : vector<1x16x8xi32>
    %21 = tpu.iota {dimensions = array<i32: 1>} : vector<1x16x1xi32>
    %c2_i32 = arith.constant 2 : i32
    %22 = arith.muli %arg0, %c2_i32 : i32
    %c0_i32 = arith.constant 0 : i32
    %23 = arith.addi %22, %c0_i32 : i32
    %24 = arith.index_cast %23 : i32 to index
    %25 = memref.load %arg1[%24] : memref<2xi32, #tpu.memory_space<smem>>
    %c2_i32_10 = arith.constant 2 : i32
    %26 = arith.muli %arg0, %c2_i32_10 : i32
    %c0_i32_11 = arith.constant 0 : i32
    %27 = arith.addi %26, %c0_i32_11 : i32
    %28 = arith.index_cast %27 : i32 to index
    %29 = memref.load %arg2[%28] : memref<2xi32, #tpu.memory_space<smem>>
    %30 = vector.broadcast %25 : i32 to vector<1x16x8xi32>
    %31 = arith.cmpi slt, %19, %30 : vector<1x16x8xi32>
    %32 = vector.broadcast %29 : i32 to vector<1x16x8xi32>
    %33 = arith.cmpi slt, %20, %32 : vector<1x16x8xi32>
    %34 = arith.andi %31, %33 : vector<1x16x8xi1>
    %cst_12 = arith.constant 0.000000e+00 : f32
    %cst_13 = arith.constant -1.000000e+30 : f32
    %35 = vector.broadcast %cst_12 : f32 to vector<1x16x8xf32>
    %36 = vector.broadcast %cst_13 : f32 to vector<1x16x8xf32>
    %37 = arith.select %34, %35, %36 : vector<1x16x8xi1>, vector<1x16x8xf32>
    %38 = vector.broadcast %25 : i32 to vector<1x16x1xi32>
    %39 = arith.cmpi slt, %21, %38 : vector<1x16x1xi32>
    %40 = arith.extui %39 : vector<1x16x1xi1> to vector<1x16x1xi32>
    %41 = arith.sitofp %40 : vector<1x16x1xi32> to vector<1x16x1xf32>
    %c2_i32_14 = arith.constant 2 : i32
    %42 = arith.muli %arg0, %c2_i32_14 : i32
    %c1_i32 = arith.constant 1 : i32
    %43 = arith.addi %42, %c1_i32 : i32
    %44 = arith.index_cast %43 : i32 to index
    %45 = memref.load %arg1[%44] : memref<2xi32, #tpu.memory_space<smem>>
    %c2_i32_15 = arith.constant 2 : i32
    %46 = arith.muli %arg0, %c2_i32_15 : i32
    %c1_i32_16 = arith.constant 1 : i32
    %47 = arith.addi %46, %c1_i32_16 : i32
    %48 = arith.index_cast %47 : i32 to index
    %49 = memref.load %arg2[%48] : memref<2xi32, #tpu.memory_space<smem>>
    %50 = vector.broadcast %45 : i32 to vector<1x16x8xi32>
    %51 = arith.cmpi slt, %19, %50 : vector<1x16x8xi32>
    %52 = vector.broadcast %49 : i32 to vector<1x16x8xi32>
    %53 = arith.cmpi slt, %20, %52 : vector<1x16x8xi32>
    %54 = arith.andi %51, %53 : vector<1x16x8xi1>
    %cst_17 = arith.constant 0.000000e+00 : f32
    %cst_18 = arith.constant -1.000000e+30 : f32
    %55 = vector.broadcast %cst_17 : f32 to vector<1x16x8xf32>
    %56 = vector.broadcast %cst_18 : f32 to vector<1x16x8xf32>
    %57 = arith.select %54, %55, %56 : vector<1x16x8xi1>, vector<1x16x8xf32>
    %58 = vector.broadcast %45 : i32 to vector<1x16x1xi32>
    %59 = arith.cmpi slt, %21, %58 : vector<1x16x1xi32>
    %60 = arith.extui %59 : vector<1x16x1xi1> to vector<1x16x1xi32>
    %61 = arith.sitofp %60 : vector<1x16x1xi32> to vector<1x16x1xf32>
    %62 = tpu.concatenate %37, %57 in 0 : vector<1x16x8xf32>, vector<1x16x8xf32> -> vector<2x16x8xf32>
    %63 = tpu.concatenate %41, %61 in 0 : vector<1x16x1xf32>, vector<1x16x1xf32> -> vector<2x16x1xf32>
    %64 = arith.addf %18, %62 : vector<2x16x8xf32>
    %cst_19 = arith.constant dense<0xFF800000> : vector<2x16xf32>
    %65 = vector.multi_reduction <maximumf>, %64, %cst_19 [2] : vector<2x16x8xf32> to vector<2x16xf32>
    %66 = vector.shape_cast %65 : vector<2x16xf32> to vector<2x16x1xf32>
    %67 = vector.broadcast %66 : vector<2x16x1xf32> to vector<2x16x8xf32>
    %68 = arith.subf %64, %67 : vector<2x16x8xf32>
    %69 = math.exp %68 : vector<2x16x8xf32>
    %cst_20 = arith.constant dense<0.000000e+00> : vector<2x16xf32>
    %70 = vector.multi_reduction <add>, %69, %cst_20 [2] : vector<2x16x8xf32> to vector<2x16xf32>
    %71 = vector.shape_cast %70 : vector<2x16xf32> to vector<2x16x1xf32>
    %cst_21 = arith.constant 1.000000e+00 : f32
    %72 = vector.broadcast %cst_21 : f32 to vector<2x16x1xf32>
    %73 = arith.divf %72, %71 : vector<2x16x1xf32>
    %74 = vector.broadcast %73 : vector<2x16x1xf32> to vector<2x16x8xf32>
    %75 = arith.mulf %69, %74 : vector<2x16x8xf32>
    "tpu.trace_start"() <{level = 10 : i32, message = "btj,bjd->btd"}> : () -> ()
    %cst_22 = arith.constant dense<0.000000e+00> : vector<2x16x32xf32>
    %76 = tpu.matmul %75, %1, %cst_22 {dimension_numbers = #tpu.dot_dimension_numbers<[2], [1], [1], [2], [0, 0, 0, 1, 1, 2], [0], [0]>} : vector<2x16x8xf32>, vector<2x8x32xf32>, vector<2x16x32xf32> -> vector<2x16x32xf32>
    "tpu.trace_stop"() : () -> ()
    %cst_23 = arith.constant dense<0xFF800000> : vector<2x1xf32>
    %77 = vector.multi_reduction <maximumf>, %66, %cst_23 [1] : vector<2x16x1xf32> to vector<2x1xf32>
    %78 = vector.shape_cast %77 : vector<2x1xf32> to vector<2x1x1xf32>
    %79 = vector.broadcast %78 : vector<2x1x1xf32> to vector<2x16x1xf32>
    %80 = arith.subf %66, %79 : vector<2x16x1xf32>
    %81 = math.exp %80 : vector<2x16x1xf32>
    %cst_24 = arith.constant dense<0.000000e+00> : vector<2x1xf32>
    %82 = vector.multi_reduction <add>, %81, %cst_24 [1] : vector<2x16x1xf32> to vector<2x1xf32>
    %83 = vector.shape_cast %82 : vector<2x1xf32> to vector<2x1x1xf32>
    %cst_25 = arith.constant 1.000000e+00 : f32
    %84 = vector.broadcast %cst_25 : f32 to vector<2x1x1xf32>
    %85 = arith.divf %84, %83 : vector<2x1x1xf32>
    %86 = vector.broadcast %85 : vector<2x1x1xf32> to vector<2x16x1xf32>
    %87 = arith.mulf %81, %86 : vector<2x16x1xf32>
    %88 = vector.broadcast %87 : vector<2x16x1xf32> to vector<2x16x32xf32>
    %89 = arith.mulf %88, %0 : vector<2x16x32xf32>
    %cst_26 = arith.constant dense<0.000000e+00> : vector<2x32xf32>
    %90 = vector.multi_reduction <add>, %89, %cst_26 [1] : vector<2x16x32xf32> to vector<2x32xf32>
    %91 = vector.shape_cast %90 : vector<2x32xf32> to vector<2x1x32xf32>
    %92 = vector.broadcast %63 : vector<2x16x1xf32> to vector<2x16x32xf32>
    %93 = arith.mulf %0, %92 : vector<2x16x32xf32>
    %c0_27 = arith.constant 0 : index
    %c0_28 = arith.constant 0 : index
    %c0_29 = arith.constant 0 : index
    %94 = vector.load %arg6[%c0_27, %c0_28, %c0_29] : memref<2x16x128xf32, #tpu.memory_space<vmem>>, vector<2x16x32xf32>
    tpu.vector_store %arg6[%c0_27, %c0_28, %c0_29], %93 {strides = array<i32>} : memref<2x16x128xf32, #tpu.memory_space<vmem>>, vector<2x16x32xf32>,
    %95 = vector.broadcast %63 : vector<2x16x1xf32> to vector<2x16x32xf32>
    %96 = arith.mulf %76, %95 : vector<2x16x32xf32>
    %c0_30 = arith.constant 0 : index
    %c0_31 = arith.constant 0 : index
    %c32 = arith.constant 32 : index
    %97 = vector.load %arg6[%c0_30, %c0_31, %c32] : memref<2x16x128xf32, #tpu.memory_space<vmem>>, vector<2x16x32xf32>
    tpu.vector_store %arg6[%c0_30, %c0_31, %c32], %96 {strides = array<i32>} : memref<2x16x128xf32, #tpu.memory_space<vmem>>, vector<2x16x32xf32>,
    %98 = arith.mulf %93, %76 : vector<2x16x32xf32>
    %c0_32 = arith.constant 0 : index
    %c0_33 = arith.constant 0 : index
    %c64 = arith.constant 64 : index
    %99 = vector.load %arg6[%c0_32, %c0_33, %c64] : memref<2x16x128xf32, #tpu.memory_space<vmem>>, vector<2x16x32xf32>
    tpu.vector_store %arg6[%c0_32, %c0_33, %c64], %98 {strides = array<i32>} : memref<2x16x128xf32, #tpu.memory_space<vmem>>, vector<2x16x32xf32>,
    %100 = vector.broadcast %91 : vector<2x1x32xf32> to vector<2x16x32xf32>
    %101 = arith.mulf %93, %100 : vector<2x16x32xf32>
    %c0_34 = arith.constant 0 : index
    %c0_35 = arith.constant 0 : index
    %c96 = arith.constant 96 : index
    %102 = vector.load %arg6[%c0_34, %c0_35, %c96] : memref<2x16x128xf32, #tpu.memory_space<vmem>>, vector<2x16x32xf32>
    tpu.vector_store %arg6[%c0_34, %c0_35, %c96], %101 {strides = array<i32>} : memref<2x16x128xf32, #tpu.memory_space<vmem>>, vector<2x16x32xf32>,
    return
  }
  func.func @transform_0(%arg0: i32, %arg1: memref<2xi32, #tpu.memory_space<smem>>, %arg2: memref<2xi32, #tpu.memory_space<smem>>) -> (i32, i32, i32) {
    %c0_i32 = arith.constant 0 : i32
    %c0_i32_0 = arith.constant 0 : i32
    %c0_i32_1 = arith.constant 0 : i32
    return %arg0, %c0_i32, %c0_i32_0 : i32, i32, i32
  }
  func.func @transform_1(%arg0: i32, %arg1: memref<2xi32, #tpu.memory_space<smem>>, %arg2: memref<2xi32, #tpu.memory_space<smem>>) -> (i32, i32, i32) {
    %c0_i32 = arith.constant 0 : i32
    %c0_i32_0 = arith.constant 0 : i32
    %c0_i32_1 = arith.constant 0 : i32
    return %arg0, %c0_i32, %c0_i32_0 : i32, i32, i32
  }
  func.func @transform_2(%arg0: i32, %arg1: memref<2xi32, #tpu.memory_space<smem>>, %arg2: memref<2xi32, #tpu.memory_space<smem>>) -> (i32, i32) {
    %c0_i32 = arith.constant 0 : i32
    %c0_i32_0 = arith.constant 0 : i32
    %c0_i32_1 = arith.constant 0 : i32
    return %c0_i32, %c0_i32_0 : i32, i32
  }
  func.func @transform_3(%arg0: i32, %arg1: memref<2xi32, #tpu.memory_space<smem>>, %arg2: memref<2xi32, #tpu.memory_space<smem>>) -> (i32, i32, i32) {
    %c0_i32 = arith.constant 0 : i32
    %c0_i32_0 = arith.constant 0 : i32
    %c0_i32_1 = arith.constant 0 : i32
    return %arg0, %c0_i32, %c0_i32_0 : i32, i32, i32
  }
}

</mosaic_0001>

<llo_original>
// kernel: tpu_custom_call.1
$region0: #{tpu_custom_call.1}
  #allocation0 [shape = 'u32[]', space=smem, size = 0x4, offset = 0x4, fixed_abs, tag = 'smem constant byte address 0x4 - core index']
  #allocation1 [shape = 'u32[144,128]{1,0:T(1,128)}', space=vmem, size = 0x12000, scoped, tag = 'internal scratch']
  #allocation2 [shape = 's32[1]{0}', space=sflag, size = 0x4, scoped, tag = 'scoped memory for tpu_custom_call.1']
  #allocation3 [shape = 'u8[512]{0}', space=smem, size = 0x200, scoped, tag = 'prefetched SMEM operand 0']
  #allocation4 [shape = 'u8[512]{0}', space=smem, size = 0x200, scoped, tag = 'prefetched SMEM operand 1']
  %s0 = inlined_call_operand.hbm [shape: s32[2], index: 0, kind: input, shape index: {}]
  %s1 = inlined_call_operand.vmem [shape: s32[2], index: 1, kind: input, shape index: {}]
  %s2 = inlined_call_operand.hbm [shape: f32[2,16,32], index: 2, kind: input, shape index: {}]
  %s3 = inlined_call_operand.hbm [shape: f32[2,8,32], index: 3, kind: input, shape index: {}]
  %s4 = inlined_call_operand.vmem [shape: f32[3,32], index: 4, kind: input, shape index: {}]
  %s5 = inlined_call_operand.hbm [shape: f32[2,16,128], index: 5, kind: output, shape index: {}]
  %s6 = sld [smem:[#allocation0]]
  $region30: #{tpu_custom_call.1} parent=0
    _
  %s8 = ssub.s32 1, %s6
  %s9 = scalar_select 0, %s8, %s6
  %11 = dma.hbm_to_smem %s0, 16, [#allocation3], [#allocation2]
  %s12 = sshll.u32 %s1, 4
  %s13 = int_to_ptr.vmem [resolvable:$true] %s12
  %15 = dma.vmem_to_smem %s13, 16, [#allocation4], [#allocation2]
  %16 = dma.done [#allocation2], 32
  %17 = sfence
  $region1: #{tpu_custom_call.1} parent=0
    #allocation5 [shape = 'u8[16384]{0}', space=vmem, size = 0x4000, scoped, tag = 'input window, operand 2, single buffered']
    #allocation6 [shape = 's32[1]{0}', space=sflag, size = 0x4, scoped, tag = 'scoped memory for tpu_custom_call.1']
    #allocation7 [shape = 's32[1]{0}', space=sflag, size = 0x4, scoped, tag = 'scoped memory for tpu_custom_call.1']
    #allocation8 [shape = 'u8[8192]{0}', space=vmem, size = 0x2000, scoped, tag = 'input window, operand 3, single buffered']
    #allocation9 [shape = 's32[1]{0}', space=sflag, size = 0x4, scoped, tag = 'scoped memory for tpu_custom_call.1']
    #allocation10 [shape = 'u8[16384]{0}', space=vmem, size = 0x4000, scoped, tag = 'output window, operand 0, single buffered']
    %18 = vsyncpa [#allocation6], 0
    %19 = vsyncpa [#allocation9], 0
    %20 = vsyncpa [#allocation7], 0
    // Predicated region
    $region2: #{tpu_custom_call.1} parent=1 // pred_check
      _
    $region3: #{tpu_custom_call.1} parent=1 // pred_check_branch
      %22 = sbr.rel (0) target = $region5
    $region4: #{tpu_custom_call.1} parent=1 // pred_region
      %s24 = ssub.s32 512, 512
      %25 = vsyncadd [#allocation6], %s24
      %s26 = sshll.u32 [#allocation5], 4
      %s27 = int_to_ptr.vmem [resolvable:$true] %s26
      %32 = dma.hbm_to_vmem [thread:$0]  %s2, 512, %s27, [#allocation6], 128, 128, 8
    $region5: #{tpu_custom_call.1} parent=1 // pred_fallthru
      _
    // Predicated region
    $region6: #{tpu_custom_call.1} parent=1 // pred_check
      _
    $region7: #{tpu_custom_call.1} parent=1 // pred_check_branch
      %34 = sbr.rel (0) target = $region9
    $region8: #{tpu_custom_call.1} parent=1 // pred_region
      %s36 = ssub.s32 256, 256
      %37 = vsyncadd [#allocation9], %s36
      %s38 = sshll.u32 [#allocation8], 4
      %s39 = int_to_ptr.vmem [resolvable:$true] %s38
      %44 = dma.hbm_to_vmem [thread:$0]  %s3, 256, %s39, [#allocation9], 128, 128, 8
    $region9: #{tpu_custom_call.1} parent=1 // pred_fallthru
      _
    // Predicated region
    $region10: #{tpu_custom_call.1} parent=1 // pred_check
      _
    $region11: #{tpu_custom_call.1} parent=1 // pred_check_branch
      %46 = sbr.rel (0) target = $region13
    $region12: #{tpu_custom_call.1} parent=1 // pred_region
      _
    $region13: #{tpu_custom_call.1} parent=1 // pred_fallthru
      _
    // Predicated region
    $region14: #{tpu_custom_call.1} parent=1 // pred_check
      _
    $region15: #{tpu_custom_call.1} parent=1 // pred_check_branch
      %48 = sbr.rel (0) target = $region17
    $region16: #{tpu_custom_call.1} parent=1 // pred_region
      %49 = dma.done [#allocation6], 512
    $region17: #{tpu_custom_call.1} parent=1 // pred_fallthru
      _
    // Predicated region
    $region18: #{tpu_custom_call.1} parent=1 // pred_check
      _
    $region19: #{tpu_custom_call.1} parent=1 // pred_check_branch
      %51 = sbr.rel (0) target = $region21
    $region20: #{tpu_custom_call.1} parent=1 // pred_region
      %52 = dma.done [#allocation9], 256
    $region21: #{tpu_custom_call.1} parent=1 // pred_fallthru
      _
    %v53 = vld [vmem:[#allocation5] sm:$0xff]
    %v54 = vld [vmem:[#allocation5 + $0x8] sm:$0xff]
    %v55 = vld [vmem:[#allocation5 + $0x10] sm:$0xff]
    %v56 = vld [vmem:[#allocation5 + $0x18] sm:$0xff]
    %v57 = vld [vmem:[#allocation8] sm:$0xff]
    %v58 = vld [vmem:[#allocation8 + $0x8] sm:$0xff]
    %v59 = vld [vmem:[%s4] sm:$0x1]
    %v60 = vld [vmem:[%s4 + $0x1] sm:$0x1]
    %v61 = vld [vmem:[%s4 + $0x2] sm:$0x1]
    %v62 = vlaneseq
    %v63 = vshrl.u32 %v62, 7
    %v64 = vsub.s32 0, %v63
    %v65 = vrot.slane %v61, %v64
    %v66 = vmul.f32 %v53, %v65
    %v67 = vmul.f32 %v54, %v65
    %v68 = vmul.f32 %v55, %v65
    %v69 = vmul.f32 %v56, %v65
    %v70 = vlaneseq
    %v71 = vshrl.u32 %v70, 7
    %v72 = vsub.s32 0, %v71
    %v73 = vrot.slane %v60, %v72
    %v74 = vadd.f32 %v66, %v73
    %v75 = vadd.f32 %v67, %v73
    %v76 = vadd.f32 %v68, %v73
    %v77 = vadd.f32 %v69, %v73
    %v78 = vlaneseq
    %v79 = vshrl.u32 %v78, 7
    %v80 = vsub.s32 0, %v79
    %v81 = vrot.slane %v59, %v80
    %v82 = vmul.f32 %v53, %v81
    %v83 = vmul.f32 %v54, %v81
    %v84 = vmul.f32 %v55, %v81
    %v85 = vmul.f32 %v56, %v81
    %vm86 = vcmask 261120
    %v87 = vsel %vm86, %v82, 0.0
    %88 = vadd.xlane.f32.xlu0 %v87
    %v89 = vpop.xlane.xlu0 %88
    %v90 = vsel %vm86, %v83, 0.0
    %91 = vadd.xlane.f32.xlu0 %v90
    %v92 = vpop.xlane.xlu0 %91
    %v93 = vsel %vm86, %v84, 0.0
    %94 = vadd.xlane.f32.xlu0 %v93
    %v95 = vpop.xlane.xlu0 %94
    %v96 = vsel %vm86, %v85, 0.0
    %97 = vadd.xlane.f32.xlu0 %v96
    %v98 = vpop.xlane.xlu0 %97
    %v100 = vsel %vm86, %v74, 0
    %v103 = vsel %vm86, %v75, 0
    %v106 = vsel %vm86, %v57, 0
    %108 = vmatprep.subr.mxu0 0.0
    %109 = vmatpush1.xpose.msra.mxu0 %v106
    %110 = vmatprep.subr.mxu0 0.0
    %111 = vmatpush1.xpose.msra.mxu0 0.0
    %112 = vmatprep.subr.mxu0 0.0
    %113 = vmatpush1.xpose.msra.mxu0 0.0
    %114 = vmatprep.subr.mxu0 0.0
    %115 = vmatpush1.xpose.msra.mxu0 0.0
    %116 = vmatprep.subr.mxu0 0.0
    %117 = vmatpush1.xpose.msra.mxu0 0.0
    %118 = vmatprep.subr.mxu0 0.0
    %119 = vmatpush1.xpose.msra.mxu0 0.0
    %120 = vmatprep.subr.mxu0 0.0
    %121 = vmatpush1.xpose.msra.mxu0 0.0
    %122 = vmatprep.subr.mxu0 0.0
    %123 = vmatpush1.xpose.msra.mxu0 0.0
    %124 = vmatprep.subr.mxu0 0.0
    %125 = vmatpush1.xpose.msra.mxu0 0.0
    %126 = vmatprep.subr.mxu0 0.0
    %127 = vmatpush1.xpose.msra.mxu0 0.0
    %128 = vmatprep.subr.mxu0 0.0
    %129 = vmatpush1.xpose.msra.mxu0 0.0
    %130 = vmatprep.subr.mxu0 0.0
    %131 = vmatpush1.xpose.msra.mxu0 0.0
    %132 = vmatprep.subr.mxu0 0.0
    %133 = vmatpush1.xpose.msra.mxu0 0.0
    %134 = vmatprep.subr.mxu0 0.0
    %135 = vmatpush1.xpose.msra.mxu0 0.0
    %136 = vmatprep.subr.mxu0 0.0
    %137 = vmatpush1.xpose.msra.mxu0 0.0
    %138 = vmatprep.subr.mxu0 0.0
    %139 = vmatpush1.xpose.msra.mxu0 0.0
    %140 = vmatprep.subr.mxu0 0.0
    %141 = vmatpush1.xpose.msra.mxu0 0.0
    %142 = vmatprep.subr.mxu0 0.0
    %143 = vmatpush1.xpose.msra.mxu0 0.0
    %144 = vmatprep.subr.mxu0 0.0
    %145 = vmatpush1.xpose.msra.mxu0 0.0
    %146 = vmatprep.subr.mxu0 0.0
    %147 = vmatpush1.xpose.msra.mxu0 0.0
    %148 = vmatprep.subr.mxu0 0.0
    %149 = vmatpush1.xpose.msra.mxu0 0.0
    %150 = vmatprep.subr.mxu0 0.0
    %151 = vmatpush1.xpose.msra.mxu0 0.0
    %152 = vmatprep.subr.mxu0 0.0
    %153 = vmatpush1.xpose.msra.mxu0 0.0
    %154 = vmatprep.subr.mxu0 0.0
    %155 = vmatpush1.xpose.msra.mxu0 0.0
    %156 = vmatprep.subr.mxu0 0.0
    %157 = vmatpush1.xpose.msra.mxu0 0.0
    %158 = vmatprep.subr.mxu0 0.0
    %159 = vmatpush1.xpose.msra.mxu0 0.0
    %160 = vmatprep.subr.mxu0 0.0
    %161 = vmatpush1.xpose.msra.mxu0 0.0
    %162 = vmatprep.subr.mxu0 0.0
    %163 = vmatpush1.xpose.msra.mxu0 0.0
    %164 = vmatprep.subr.mxu0 0.0
    %165 = vmatpush1.xpose.msra.mxu0 0.0
    %166 = vmatprep.subr.mxu0 0.0
    %167 = vmatpush1.xpose.msra.mxu0 0.0
    %168 = vmatprep.subr.mxu0 0.0
    %169 = vmatpush1.xpose.msra.mxu0 0.0
    %170 = vmatprep.subr.mxu0 0.0
    %171 = vmatpush1.xpose.msra.mxu0 0.0
    %172 = vmatprep.mubr.f32.mxu0 0.0
    %173 = vmatmul.mubr.f32.gmra.mrb[0].mxu0 %v100
    %v174 = vpop.f32.mrb[0].mxu0
    %v175 = vadd.f32 %v89, %v174
    %v176 = vpop.f32.mrb[0].mxu0
    %177 = vmatprep.mubr.f32.mxu0 0.0
    %178 = vmatmul.mubr.f32.gmra.mrb[0].mxu0 %v103
    %v179 = vpop.f32.mrb[0].mxu0
    %v180 = vadd.f32 %v92, %v179
    %v181 = vpop.f32.mrb[0].mxu0
    %182 = vdwg.mxu0
    %v184 = vsel %vm86, %v76, 0
    %v187 = vsel %vm86, %v77, 0
    %v190 = vsel %vm86, %v58, 0
    %192 = vmatprep.subr.mxu0 0.0
    %193 = vmatpush1.xpose.msra.mxu0 %v190
    %194 = vmatprep.subr.mxu0 0.0
    %195 = vmatpush1.xpose.msra.mxu0 0.0
    %196 = vmatprep.subr.mxu0 0.0
    %197 = vmatpush1.xpose.msra.mxu0 0.0
    %198 = vmatprep.subr.mxu0 0.0
    %199 = vmatpush1.xpose.msra.mxu0 0.0
    %200 = vmatprep.subr.mxu0 0.0
    %201 = vmatpush1.xpose.msra.mxu0 0.0
    %202 = vmatprep.subr.mxu0 0.0
    %203 = vmatpush1.xpose.msra.mxu0 0.0
    %204 = vmatprep.subr.mxu0 0.0
    %205 = vmatpush1.xpose.msra.mxu0 0.0
    %206 = vmatprep.subr.mxu0 0.0
    %207 = vmatpush1.xpose.msra.mxu0 0.0
    %208 = vmatprep.subr.mxu0 0.0
    %209 = vmatpush1.xpose.msra.mxu0 0.0
    %210 = vmatprep.subr.mxu0 0.0
    %211 = vmatpush1.xpose.msra.mxu0 0.0
    %212 = vmatprep.subr.mxu0 0.0
    %213 = vmatpush1.xpose.msra.mxu0 0.0
    %214 = vmatprep.subr.mxu0 0.0
    %215 = vmatpush1.xpose.msra.mxu0 0.0
    %216 = vmatprep.subr.mxu0 0.0
    %217 = vmatpush1.xpose.msra.mxu0 0.0
    %218 = vmatprep.subr.mxu0 0.0
    %219 = vmatpush1.xpose.msra.mxu0 0.0
    %220 = vmatprep.subr.mxu0 0.0
    %221 = vmatpush1.xpose.msra.mxu0 0.0
    %222 = vmatprep.subr.mxu0 0.0
    %223 = vmatpush1.xpose.msra.mxu0 0.0
    %224 = vmatprep.subr.mxu0 0.0
    %225 = vmatpush1.xpose.msra.mxu0 0.0
    %226 = vmatprep.subr.mxu0 0.0
    %227 = vmatpush1.xpose.msra.mxu0 0.0
    %228 = vmatprep.subr.mxu0 0.0
    %229 = vmatpush1.xpose.msra.mxu0 0.0
    %230 = vmatprep.subr.mxu0 0.0
    %231 = vmatpush1.xpose.msra.mxu0 0.0
    %232 = vmatprep.subr.mxu0 0.0
    %233 = vmatpush1.xpose.msra.mxu0 0.0
    %234 = vmatprep.subr.mxu0 0.0
    %235 = vmatpush1.xpose.msra.mxu0 0.0
    %236 = vmatprep.subr.mxu0 0.0
    %237 = vmatpush1.xpose.msra.mxu0 0.0
    %238 = vmatprep.subr.mxu0 0.0
    %239 = vmatpush1.xpose.msra.mxu0 0.0
    %240 = vmatprep.subr.mxu0 0.0
    %241 = vmatpush1.xpose.msra.mxu0 0.0
    %242 = vmatprep.subr.mxu0 0.0
    %243 = vmatpush1.xpose.msra.mxu0 0.0
    %244 = vmatprep.subr.mxu0 0.0
    %245 = vmatpush1.xpose.msra.mxu0 0.0
    %246 = vmatprep.subr.mxu0 0.0
    %247 = vmatpush1.xpose.msra.mxu0 0.0
    %248 = vmatprep.subr.mxu0 0.0
    %249 = vmatpush1.xpose.msra.mxu0 0.0
    %250 = vmatprep.subr.mxu0 0.0
    %251 = vmatpush1.xpose.msra.mxu0 0.0
    %252 = vmatprep.subr.mxu0 0.0
    %253 = vmatpush1.xpose.msra.mxu0 0.0
    %254 = vmatprep.subr.mxu0 0.0
    %255 = vmatpush1.xpose.msra.mxu0 0.0
    %256 = vmatprep.mubr.f32.mxu0 0.0
    %257 = vmatmul.mubr.f32.gmra.mrb[0].mxu0 %v184
    %v258 = vpop.f32.mrb[0].mxu0
    %v259 = vadd.f32 %v95, %v258
    %v260 = vpop.f32.mrb[0].mxu0
    %261 = vmatprep.mubr.f32.mxu0 0.0
    %262 = vmatmul.mubr.f32.gmra.mrb[0].mxu0 %v187
    %v263 = vpop.f32.mrb[0].mxu0
    %v264 = vadd.f32 %v98, %v263
    %v265 = vpop.f32.mrb[0].mxu0
    %266 = vdwg.mxu0
    %v267 = vlaneseq
    %v268 = vshrl.u32 %v267, 7
    %v269 = vadd.s32 %v268, 8
    %v270 = vlaneseq
    %v271 = vand.u32 %v270, 127
    %s272 = smul.u32 0, 2
    %s273 = sld [smem:[#allocation3 + %s272]]
    %s274 = sld [smem:[#allocation4 + %s272]]
    %v275 = vstv %s273
    %vm276 = vcmp.lt.s32.totalorder %v268, %v275
    %vm277 = vcmp.lt.s32.totalorder %v269, %v275
    %v278 = vstv %s274
    %vm279 = vcmp.lt.s32.totalorder %v271, %v278
    %vm280 = vmand %vm276, %vm279
    %vm281 = vmand %vm277, %vm279
    %v282 = vsel %vm280, 0.0, -1e+30
    %v283 = vsel %vm281, 0.0, -1e+30
    %v284 = vsel %vm276, 1, 0
    %v285 = vsel %vm277, 1, 0
    %v286 = vcvt.s32.f32 %v284
    %v287 = vcvt.s32.f32 %v285
    %s288 = sadd.s32 %s272, 1
    %s289 = sld [smem:[#allocation3 + %s288]]
    %s290 = sld [smem:[#allocation4 + %s288]]
    %v291 = vstv %s289
    %vm292 = vcmp.lt.s32.totalorder %v268, %v291
    %vm293 = vcmp.lt.s32.totalorder %v269, %v291
    %v294 = vstv %s290
    %vm295 = vcmp.lt.s32.totalorder %v271, %v294
    %vm296 = vmand %vm292, %vm295
    %vm297 = vmand %vm293, %vm295
    %v298 = vsel %vm296, 0.0, -1e+30
    %v299 = vsel %vm297, 0.0, -1e+30
    %v300 = vsel %vm292, 1, 0
    %v301 = vsel %vm293, 1, 0
    %v302 = vcvt.s32.f32 %v300
    %v303 = vcvt.s32.f32 %v301
    %v304 = vadd.f32 %v175, %v282
    %v305 = vadd.f32 %v180, %v283
    %v306 = vadd.f32 %v259, %v298
    %v307 = vadd.f32 %v264, %v299
    %vm308 = vcmask 64512
    %v309 = vsel %vm308, %v304, -inf
    %310 = vmax.xlane.f32.xlu0 %v309
    %v311 = vpop.xlane.xlu0 %310
    %v312 = vsel %vm308, %v305, -inf
    %313 = vmax.xlane.f32.xlu0 %v312
    %v314 = vpop.xlane.xlu0 %313
    %v315 = vsel %vm308, %v306, -inf
    %316 = vmax.xlane.f32.xlu0 %v315
    %v317 = vpop.xlane.xlu0 %316
    %v318 = vsel %vm308, %v307, -inf
    %319 = vmax.xlane.f32.xlu0 %v318
    %v320 = vpop.xlane.xlu0 %319
    %v321 = vsub.f32 %v304, %v311
    %v322 = vsub.f32 %v305, %v314
    %v323 = vsub.f32 %v306, %v317
    %v324 = vsub.f32 %v307, %v320
    %v325 = vmul.f32 %v321, 1.442695
    %v326 = vpow.pop %v325
    %v327 = vmul.f32 %v322, 1.442695
    %v328 = vpow.pop %v327
    %v329 = vmul.f32 %v323, 1.442695
    %v330 = vpow.pop %v329
    %v331 = vmul.f32 %v324, 1.442695
    %v332 = vpow.pop %v331
    %v333 = vsel %vm308, %v326, 0.0
    %334 = vadd.xlane.f32.xlu0 %v333
    %v335 = vpop.xlane.xlu0 %334
    %v336 = vsel %vm308, %v328, 0.0
    %337 = vadd.xlane.f32.xlu0 %v336
    %v338 = vpop.xlane.xlu0 %337
    %v339 = vsel %vm308, %v330, 0.0
    %340 = vadd.xlane.f32.xlu0 %v339
    %v341 = vpop.xlane.xlu0 %340
    %v342 = vsel %vm308, %v332, 0.0
    %343 = vadd.xlane.f32.xlu0 %v342
    %v344 = vpop.xlane.xlu0 %343
    %v345 = vrcp.pop %v335
    %v346 = vmul.f32 1.0, %v345
    %v347 = vrcp.pop %v338
    %v348 = vmul.f32 1.0, %v347
    %v349 = vrcp.pop %v341
    %v350 = vmul.f32 1.0, %v349
    %v351 = vrcp.pop %v344
    %v352 = vmul.f32 1.0, %v351
    %v353 = vmul.f32 %v326, %v346
    %v354 = vmul.f32 %v328, %v348
    %v355 = vmul.f32 %v330, %v350
    %v356 = vmul.f32 %v332, %v352
    %v358 = vsel %vm308, %v353, 0
    %v361 = vsel %vm308, %v354, 0
    %363 = vmatprep.subr.mxu0 0.0
    %364 = vmatpush1.msra.mxu0 %v57
    %365 = vmatprep.subr.mxu0 0.0
    %366 = vmatpush1.msra.mxu0 0.0
    %367 = vmatprep.subr.mxu0 0.0
    %368 = vmatpush1.msra.mxu0 0.0
    %369 = vmatprep.subr.mxu0 0.0
    %370 = vmatpush1.msra.mxu0 0.0
    %371 = vmatprep.subr.mxu0 0.0
    %372 = vmatpush1.msra.mxu0 0.0
    %373 = vmatprep.subr.mxu0 0.0
    %374 = vmatpush1.msra.mxu0 0.0
    %375 = vmatprep.subr.mxu0 0.0
    %376 = vmatpush1.msra.mxu0 0.0
    %377 = vmatprep.subr.mxu0 0.0
    %378 = vmatpush1.msra.mxu0 0.0
    %379 = vmatprep.subr.mxu0 0.0
    %380 = vmatpush1.msra.mxu0 0.0
    %381 = vmatprep.subr.mxu0 0.0
    %382 = vmatpush1.msra.mxu0 0.0
    %383 = vmatprep.subr.mxu0 0.0
    %384 = vmatpush1.msra.mxu0 0.0
    %385 = vmatprep.subr.mxu0 0.0
    %386 = vmatpush1.msra.mxu0 0.0
    %387 = vmatprep.subr.mxu0 0.0
    %388 = vmatpush1.msra.mxu0 0.0
    %389 = vmatprep.subr.mxu0 0.0
    %390 = vmatpush1.msra.mxu0 0.0
    %391 = vmatprep.subr.mxu0 0.0
    %392 = vmatpush1.msra.mxu0 0.0
    %393 = vmatprep.subr.mxu0 0.0
    %394 = vmatpush1.msra.mxu0 0.0
    %395 = vmatprep.subr.mxu0 0.0
    %396 = vmatpush1.msra.mxu0 0.0
    %397 = vmatprep.subr.mxu0 0.0
    %398 = vmatpush1.msra.mxu0 0.0
    %399 = vmatprep.subr.mxu0 0.0
    %400 = vmatpush1.msra.mxu0 0.0
    %401 = vmatprep.subr.mxu0 0.0
    %402 = vmatpush1.msra.mxu0 0.0
    %403 = vmatprep.subr.mxu0 0.0
    %404 = vmatpush1.msra.mxu0 0.0
    %405 = vmatprep.subr.mxu0 0.0
    %406 = vmatpush1.msra.mxu0 0.0
    %407 = vmatprep.subr.mxu0 0.0
    %408 = vmatpush1.msra.mxu0 0.0
    %409 = vmatprep.subr.mxu0 0.0
    %410 = vmatpush1.msra.mxu0 0.0
    %411 = vmatprep.subr.mxu0 0.0
    %412 = vmatpush1.msra.mxu0 0.0
    %413 = vmatprep.subr.mxu0 0.0
    %414 = vmatpush1.msra.mxu0 0.0
    %415 = vmatprep.subr.mxu0 0.0
    %416 = vmatpush1.msra.mxu0 0.0
    %417 = vmatprep.subr.mxu0 0.0
    %418 = vmatpush1.msra.mxu0 0.0
    %419 = vmatprep.subr.mxu0 0.0
    %420 = vmatpush1.msra.mxu0 0.0
    %421 = vmatprep.subr.mxu0 0.0
    %422 = vmatpush1.msra.mxu0 0.0
    %423 = vmatprep.subr.mxu0 0.0
    %424 = vmatpush1.msra.mxu0 0.0
    %425 = vmatprep.subr.mxu0 0.0
    %426 = vmatpush1.msra.mxu0 0.0
    %427 = vmatprep.mubr.f32.mxu0 0.0
    %428 = vmatmul.mubr.f32.gmra.mrb[0].mxu0 %v358
    %v429 = vpop.f32.mrb[0].mxu0
    %v430 = vadd.f32 0.0, %v429
    %v431 = vpop.f32.mrb[0].mxu0
    %432 = vmatprep.mubr.f32.mxu0 0.0
    %433 = vmatmul.mubr.f32.gmra.mrb[0].mxu0 %v361
    %v434 = vpop.f32.mrb[0].mxu0
    %v435 = vadd.f32 0.0, %v434
    %v436 = vpop.f32.mrb[0].mxu0
    %437 = vdwg.mxu0
    %v439 = vsel %vm308, %v355, 0
    %v442 = vsel %vm308, %v356, 0
    %444 = vmatprep.subr.mxu0 0.0
    %445 = vmatpush1.msra.mxu0 %v58
    %446 = vmatprep.subr.mxu0 0.0
    %447 = vmatpush1.msra.mxu0 0.0
    %448 = vmatprep.subr.mxu0 0.0
    %449 = vmatpush1.msra.mxu0 0.0
    %450 = vmatprep.subr.mxu0 0.0
    %451 = vmatpush1.msra.mxu0 0.0
    %452 = vmatprep.subr.mxu0 0.0
    %453 = vmatpush1.msra.mxu0 0.0
    %454 = vmatprep.subr.mxu0 0.0
    %455 = vmatpush1.msra.mxu0 0.0
    %456 = vmatprep.subr.mxu0 0.0
    %457 = vmatpush1.msra.mxu0 0.0
    %458 = vmatprep.subr.mxu0 0.0
    %459 = vmatpush1.msra.mxu0 0.0
    %460 = vmatprep.subr.mxu0 0.0
    %461 = vmatpush1.msra.mxu0 0.0
    %462 = vmatprep.subr.mxu0 0.0
    %463 = vmatpush1.msra.mxu0 0.0
    %464 = vmatprep.subr.mxu0 0.0
    %465 = vmatpush1.msra.mxu0 0.0
    %466 = vmatprep.subr.mxu0 0.0
    %467 = vmatpush1.msra.mxu0 0.0
    %468 = vmatprep.subr.mxu0 0.0
    %469 = vmatpush1.msra.mxu0 0.0
    %470 = vmatprep.subr.mxu0 0.0
    %471 = vmatpush1.msra.mxu0 0.0
    %472 = vmatprep.subr.mxu0 0.0
    %473 = vmatpush1.msra.mxu0 0.0
    %474 = vmatprep.subr.mxu0 0.0
    %475 = vmatpush1.msra.mxu0 0.0
    %476 = vmatprep.subr.mxu0 0.0
    %477 = vmatpush1.msra.mxu0 0.0
    %478 = vmatprep.subr.mxu0 0.0
    %479 = vmatpush1.msra.mxu0 0.0
    %480 = vmatprep.subr.mxu0 0.0
    %481 = vmatpush1.msra.mxu0 0.0
    %482 = vmatprep.subr.mxu0 0.0
    %483 = vmatpush1.msra.mxu0 0.0
    %484 = vmatprep.subr.mxu0 0.0
    %485 = vmatpush1.msra.mxu0 0.0
    %486 = vmatprep.subr.mxu0 0.0
    %487 = vmatpush1.msra.mxu0 0.0
    %488 = vmatprep.subr.mxu0 0.0
    %489 = vmatpush1.msra.mxu0 0.0
    %490 = vmatprep.subr.mxu0 0.0
    %491 = vmatpush1.msra.mxu0 0.0
    %492 = vmatprep.subr.mxu0 0.0
    %493 = vmatpush1.msra.mxu0 0.0
    %494 = vmatprep.subr.mxu0 0.0
    %495 = vmatpush1.msra.mxu0 0.0
    %496 = vmatprep.subr.mxu0 0.0
    %497 = vmatpush1.msra.mxu0 0.0
    %498 = vmatprep.subr.mxu0 0.0
    %499 = vmatpush1.msra.mxu0 0.0
    %500 = vmatprep.subr.mxu0 0.0
    %501 = vmatpush1.msra.mxu0 0.0
    %502 = vmatprep.subr.mxu0 0.0
    %503 = vmatpush1.msra.mxu0 0.0
    %504 = vmatprep.subr.mxu0 0.0
    %505 = vmatpush1.msra.mxu0 0.0
    %506 = vmatprep.subr.mxu0 0.0
    %507 = vmatpush1.msra.mxu0 0.0
    %508 = vmatprep.mubr.f32.mxu0 0.0
    %509 = vmatmul.mubr.f32.gmra.mrb[0].mxu0 %v439
    %v510 = vpop.f32.mrb[0].mxu0
    %v511 = vadd.f32 0.0, %v510
    %v512 = vpop.f32.mrb[0].mxu0
    %513 = vmatprep.mubr.f32.mxu0 0.0
    %514 = vmatmul.mubr.f32.gmra.mrb[0].mxu0 %v442
    %v515 = vpop.f32.mrb[0].mxu0
    %v516 = vadd.f32 0.0, %v515
    %v517 = vpop.f32.mrb[0].mxu0
    %518 = vdwg.mxu0
    %v519 = vmax.f32 %v311, %v314
    %v520 = vrot.slane %v519, 4
    %v521 = vmax.f32 %v519, %v520
    %v522 = vrot.slane %v521, 2
    %v523 = vmax.f32 %v521, %v522
    %v524 = vrot.slane %v523, 1
    %v525 = vmax.f32 %v523, %v524
    %v526 = vmax.f32 %v317, %v320
    %v527 = vrot.slane %v526, 4
    %v528 = vmax.f32 %v526, %v527
    %v529 = vrot.slane %v528, 2
    %v530 = vmax.f32 %v528, %v529
    %v531 = vrot.slane %v530, 1
    %v532 = vmax.f32 %v530, %v531
    %v533 = vsub.f32 %v311, %v525
    %v534 = vsub.f32 %v314, %v525
    %v535 = vsub.f32 %v317, %v532
    %v536 = vsub.f32 %v320, %v532
    %v537 = vmul.f32 %v533, 1.442695
    %v538 = vpow.pop %v537
    %v539 = vmul.f32 %v534, 1.442695
    %v540 = vpow.pop %v539
    %v541 = vmul.f32 %v535, 1.442695
    %v542 = vpow.pop %v541
    %v543 = vmul.f32 %v536, 1.442695
    %v544 = vpow.pop %v543
    %v545 = vadd.f32 %v538, %v540
    %v546 = vrot.slane %v545, 4
    %v547 = vadd.f32 %v545, %v546
    %v548 = vrot.slane %v547, 2
    %v549 = vadd.f32 %v547, %v548
    %v550 = vrot.slane %v549, 1
    %v551 = vadd.f32 %v549, %v550
    %v552 = vadd.f32 %v542, %v544
    %v553 = vrot.slane %v552, 4
    %v554 = vadd.f32 %v552, %v553
    %v555 = vrot.slane %v554, 2
    %v556 = vadd.f32 %v554, %v555
    %v557 = vrot.slane %v556, 1
    %v558 = vadd.f32 %v556, %v557
    %v559 = vrcp.pop %v551
    %v560 = vmul.f32 1.0, %v559
    %v561 = vrcp.pop %v558
    %v562 = vmul.f32 1.0, %v561
    %v563 = vmul.f32 %v538, %v560
    %v564 = vmul.f32 %v540, %v560
    %v565 = vmul.f32 %v542, %v562
    %v566 = vmul.f32 %v544, %v562
    %v567 = vmul.f32 %v563, %v53
    %v568 = vmul.f32 %v564, %v54
    %v569 = vmul.f32 %v565, %v55
    %v570 = vmul.f32 %v566, %v56
    %v571 = vsel %vm86, %v567, 0.0
    %v572 = vsel %vm86, %v568, 0.0
    %v573 = vadd.f32 %v571, %v572
    %v574 = vrot.slane %v573, 4
    %v575 = vadd.f32 %v573, %v574
    %v576 = vrot.slane %v575, 2
    %v577 = vadd.f32 %v575, %v576
    %v578 = vrot.slane %v577, 1
    %v579 = vadd.f32 %v577, %v578
    %v580 = vsel %vm86, %v569, 0.0
    %v581 = vsel %vm86, %v570, 0.0
    %v582 = vadd.f32 %v580, %v581
    %v583 = vrot.slane %v582, 4
    %v584 = vadd.f32 %v582, %v583
    %v585 = vrot.slane %v584, 2
    %v586 = vadd.f32 %v584, %v585
    %v587 = vrot.slane %v586, 1
    %v588 = vadd.f32 %v586, %v587
    %590 = vset.pattern.permute.xlu0 0
    %591 = vperm.xlu0 %590, %v286
    %v592 = vpop.permute.xlu0 %591
    %595 = vset.pattern.permute.xlu0 0
    %596 = vperm.xlu0 %595, %v287
    %v597 = vpop.permute.xlu0 %596
    %600 = vset.pattern.permute.xlu0 0
    %601 = vperm.xlu0 %600, %v302
    %v602 = vpop.permute.xlu0 %601
    %605 = vset.pattern.permute.xlu0 0
    %606 = vperm.xlu0 %605, %v303
    %v607 = vpop.permute.xlu0 %606
    %v609 = vmul.f32 %v53, %v592
    %v610 = vmul.f32 %v54, %v597
    %v611 = vmul.f32 %v55, %v602
    %v612 = vmul.f32 %v56, %v607
    %613 = vst.msk [vmem:[#allocation10] sm:$0xff] %vm86, %v609
    %614 = vst.msk [vmem:[#allocation10 + $0x8] sm:$0xff] %vm86, %v610
    %615 = vst.msk [vmem:[#allocation10 + $0x10] sm:$0xff] %vm86, %v611
    %616 = vst.msk [vmem:[#allocation10 + $0x18] sm:$0xff] %vm86, %v612
    %v617 = vmul.f32 %v430, %v592
    %v618 = vmul.f32 %v435, %v597
    %v619 = vmul.f32 %v511, %v602
    %v620 = vmul.f32 %v516, %v607
    %625 = vrot.lane.b32.xlu0 %v617, 32
    %v626 = vpop.permute.xlu0 %625
    %627 = vrot.lane.b32.xlu0 %v618, 32
    %v628 = vpop.permute.xlu0 %627
    %629 = vrot.lane.b32.xlu0 %v619, 32
    %v630 = vpop.permute.xlu0 %629
    %631 = vrot.lane.b32.xlu0 %v620, 32
    %v632 = vpop.permute.xlu0 %631
    %vm637 = vcmask 523520
    %638 = vst.msk [vmem:[#allocation10] sm:$0xff] %vm637, %v626
    %639 = vst.msk [vmem:[#allocation10 + $0x8] sm:$0xff] %vm637, %v628
    %640 = vst.msk [vmem:[#allocation10 + $0x10] sm:$0xff] %vm637, %v630
    %641 = vst.msk [vmem:[#allocation10 + $0x18] sm:$0xff] %vm637, %v632
    %v642 = vmul.f32 %v609, %v430
    %v643 = vmul.f32 %v610, %v435
    %v644 = vmul.f32 %v611, %v511
    %v645 = vmul.f32 %v612, %v516
    %650 = vrot.lane.b32.xlu0 %v642, 64
    %v651 = vpop.permute.xlu0 %650
    %652 = vrot.lane.b32.xlu0 %v643, 64
    %v653 = vpop.permute.xlu0 %652
    %654 = vrot.lane.b32.xlu0 %v644, 64
    %v655 = vpop.permute.xlu0 %654
    %656 = vrot.lane.b32.xlu0 %v645, 64
    %v657 = vpop.permute.xlu0 %656
    %vm662 = vcmask 785920
    %663 = vst.msk [vmem:[#allocation10] sm:$0xff] %vm662, %v651
    %664 = vst.msk [vmem:[#allocation10 + $0x8] sm:$0xff] %vm662, %v653
    %665 = vst.msk [vmem:[#allocation10 + $0x10] sm:$0xff] %vm662, %v655
    %666 = vst.msk [vmem:[#allocation10 + $0x18] sm:$0xff] %vm662, %v657
    %v667 = vmul.f32 %v609, %v579
    %v668 = vmul.f32 %v610, %v579
    %v669 = vmul.f32 %v611, %v588
    %v670 = vmul.f32 %v612, %v588
    %675 = vrot.lane.b32.xlu0 %v667, 96
    %v676 = vpop.permute.xlu0 %675
    %677 = vrot.lane.b32.xlu0 %v668, 96
    %v678 = vpop.permute.xlu0 %677
    %679 = vrot.lane.b32.xlu0 %v669, 96
    %v680 = vpop.permute.xlu0 %679
    %681 = vrot.lane.b32.xlu0 %v670, 96
    %v682 = vpop.permute.xlu0 %681
    %vm687 = vcmask 1048320
    %688 = vst.msk [vmem:[#allocation10] sm:$0xff] %vm687, %v676
    %689 = vst.msk [vmem:[#allocation10 + $0x8] sm:$0xff] %vm687, %v678
    %690 = vst.msk [vmem:[#allocation10 + $0x10] sm:$0xff] %vm687, %v680
    %691 = vst.msk [vmem:[#allocation10 + $0x18] sm:$0xff] %vm687, %v682
    // Predicated region
    $region22: #{tpu_custom_call.1} parent=1 // pred_check
      _
    $region23: #{tpu_custom_call.1} parent=1 // pred_check_branch
      %693 = sbr.rel (0) target = $region25
    $region24: #{tpu_custom_call.1} parent=1 // pred_region
      %s695 = ssub.s32 512, 512
      %696 = vsyncadd [#allocation7], %s695
      %s697 = sshll.u32 [#allocation10], 4
      %s698 = int_to_ptr.vmem [resolvable:$true] %s697
      %703 = dma.vmem_to_hbm [thread:$0]  %s698, 512, %s5, [#allocation7], 128, 128, 8
    $region25: #{tpu_custom_call.1} parent=1 // pred_fallthru
      _
    // Predicated region
    $region26: #{tpu_custom_call.1} parent=1 // pred_check
      _
    $region27: #{tpu_custom_call.1} parent=1 // pred_check_branch
      %705 = sbr.rel (0) target = $region29
    $region28: #{tpu_custom_call.1} parent=1 // pred_region
      %706 = dma.done [#allocation7], 512
    $region29: #{tpu_custom_call.1} parent=1 // pred_fallthru
      _
    %707 = vsyncpa [#allocation6], 1
    %708 = vsyncpa [#allocation9], 1
    %709 = vsyncpa [#allocation7], 1

</llo_original>
